<compile_context>
chip_gen: v7x
topology: tpu7x:2x2x1
jax: 0.10.0
libtpu: 0.0.40
codegen_flags: <defaults>
</compile_context>

<pallas_src>
import jax
import jax.numpy as jnp
from jax.experimental import pallas as pl
from jax.experimental.pallas import tpu as pltpu

LANE = 128     # TPU lane width (last dim)
SUBLANE = 8    # TPU sublane width (second-to-last dim, f32)


def _round_up(n, m):
    return ((n + m - 1) // m) * m


# ---------------------------------------------------------------------------
# Fused Pallas kernel (built per layer-count; everything VMEM resident)
# ---------------------------------------------------------------------------
def _make_vae_kernel(n_enc, n_dec, lat_pad, negative_slope):
    def kernel(*refs):
        idx = 0
        x_ref = refs[idx]; idx += 1
        eps_ref = refs[idx]; idx += 1
        enc = [(refs[idx + 2 * i], refs[idx + 2 * i + 1]) for i in range(n_enc)]
        idx += 2 * n_enc
        wml_ref, bml_ref = refs[idx], refs[idx + 1]; idx += 2
        dec = [(refs[idx + 2 * i], refs[idx + 2 * i + 1]) for i in range(n_dec)]
        idx += 2 * n_dec
        wout_ref, bout_ref = refs[idx], refs[idx + 1]; idx += 2
        recon_ref, mu_ref, logvar_ref = refs[idx], refs[idx + 1], refs[idx + 2]

        def lrelu(y):
            return jnp.where(y >= 0, y, negative_slope * y)   # LeakyReLU

        # ---- encoder ----
        h = x_ref[...]
        for w_ref, b_ref in enc:
            h = lrelu(jnp.dot(h, w_ref[...],
                              preferred_element_type=jnp.float32) + b_ref[...])

        # ---- fused fc_mu / fc_logvar: one matmul, two lane-aligned halves ----
        y = jnp.dot(h, wml_ref[...],
                    preferred_element_type=jnp.float32) + bml_ref[...]
        mu = y[:, :lat_pad]
        logvar = y[:, lat_pad:]
        mu_ref[...] = mu
        logvar_ref[...] = logvar

        # ---- reparameterize: z = mu + eps * exp(0.5 * logvar) ----
        z = mu + eps_ref[...] * jnp.exp(0.5 * logvar)

        # ---- decoder ----
        d = z
        for w_ref, b_ref in dec:
            d = lrelu(jnp.dot(d, w_ref[...],
                              preferred_element_type=jnp.float32) + b_ref[...])
        recon_ref[...] = (jnp.dot(d, wout_ref[...],
                                  preferred_element_type=jnp.float32)
                          + bout_ref[...])

    return kernel


# ---------------------------------------------------------------------------
# Parameter construction (same shapes as the torch module) + 128-lane padding
# ---------------------------------------------------------------------------
def init_vae_params(key, input_dim, hidden_dims, latent_dim):
    params = {"encoder": [], "decoder": []}

    def make_linear(key, fan_in, fan_out):
        kw, kb = jax.random.split(key)
        bound = 1.0 / jnp.sqrt(fan_in)   # torch.nn.Linear default scale
        w = jax.random.uniform(kw, (fan_in, fan_out), jnp.float32, -bound, bound)
        b = jax.random.uniform(kb, (fan_out,), jnp.float32, -bound, bound)
        return w, b

    keys = jax.random.split(key, 2 * len(hidden_dims) + 3)
    ki = 0
    prev = input_dim
    for h in hidden_dims:
        params["encoder"].append(make_linear(keys[ki], prev, h)); ki += 1
        prev = h
    params["fc_mu"] = make_linear(keys[ki], prev, latent_dim); ki += 1
    params["fc_logvar"] = make_linear(keys[ki], prev, latent_dim); ki += 1
    prev = latent_dim
    for h in reversed(hidden_dims):
        params["decoder"].append(make_linear(keys[ki], prev, h)); ki += 1
        prev = h
    params["decoder_out"] = make_linear(keys[ki], prev, input_dim); ki += 1
    return params


def pad_params(params, input_dim, hidden_dims, latent_dim):
    """Zero-pad every feature dim to a multiple of 128 lanes (done once)."""
    in_pad = _round_up(input_dim, LANE)
    hid_pad = [_round_up(h, LANE) for h in hidden_dims]
    lat_pad = _round_up(latent_dim, LANE)

    def pad_wb(w, b, in_p, out_p):
        wp = jnp.zeros((in_p, out_p), jnp.float32).at[: w.shape[0], : w.shape[1]].set(w)
        bp = jnp.zeros((1, out_p), jnp.float32).at[0, : b.shape[0]].set(b)
        return wp, bp

    padded = {"encoder": [], "decoder": []}
    prev_p = in_pad
    for (w, b), hp in zip(params["encoder"], hid_pad):
        padded["encoder"].append(pad_wb(w, b, prev_p, hp))
        prev_p = hp

    # Fused fc_mu / fc_logvar: weights concatenated to (prev, 2*lat_pad),
    # mu in lanes [0:lat_pad), logvar in lanes [lat_pad:2*lat_pad).
    w_mu, b_mu = params["fc_mu"]
    w_lv, b_lv = params["fc_logvar"]
    wml = jnp.zeros((prev_p, 2 * lat_pad), jnp.float32)
    wml = wml.at[: w_mu.shape[0], :latent_dim].set(w_mu)
    wml = wml.at[: w_lv.shape[0], lat_pad : lat_pad + latent_dim].set(w_lv)
    bml = jnp.zeros((1, 2 * lat_pad), jnp.float32)
    bml = bml.at[0, :latent_dim].set(b_mu)
    bml = bml.at[0, lat_pad : lat_pad + latent_dim].set(b_lv)
    padded["fc_mulogvar"] = (wml, bml)

    prev_p = lat_pad
    for (w, b), hp in zip(params["decoder"], reversed(hid_pad)):
        padded["decoder"].append(pad_wb(w, b, prev_p, hp))
        prev_p = hp
    padded["decoder_out"] = pad_wb(*params["decoder_out"], prev_p, in_pad)

    padded["dims"] = (input_dim, tuple(hidden_dims), latent_dim, in_pad, lat_pad)
    return padded


# ---------------------------------------------------------------------------
# Forward: one pallas_call, everything VMEM-resident
# ---------------------------------------------------------------------------
def vae_forward(padded_params, x, eps, *, negative_slope=0.01):
    """Returns (reconstruction, mu, logvar) — same as the torch forward()."""
    input_dim, _hidden_dims, latent_dim, in_pad, lat_pad = padded_params["dims"]
    M = x.shape[0]
    m_pad = _round_up(M, SUBLANE)

    # Pad activations to (m_pad, 128k); padded lanes/rows are zero and their
    # contributions vanish because padded weight rows/cols are zero.
    x_p = jnp.zeros((m_pad, in_pad), jnp.float32).at[:M, :input_dim].set(x)
    eps_p = jnp.zeros((m_pad, lat_pad), jnp.float32).at[:M, :latent_dim].set(eps)

    n_enc = len(padded_params["encoder"])
    n_dec = len(padded_params["decoder"])

    inputs = [x_p, eps_p]
    for w, b in padded_params["encoder"]:
        inputs += [w, b]
    inputs += list(padded_params["fc_mulogvar"])
    for w, b in padded_params["decoder"]:
        inputs += [w, b]
    inputs += list(padded_params["decoder_out"])

    kernel = _make_vae_kernel(n_enc, n_dec, lat_pad, negative_slope)

    vmem = pltpu.MemorySpace.VMEM
    out_shapes = (
        jax.ShapeDtypeStruct((m_pad, in_pad), jnp.float32),   # recon (padded)
        jax.ShapeDtypeStruct((m_pad, lat_pad), jnp.float32),  # mu    (padded)
        jax.ShapeDtypeStruct((m_pad, lat_pad), jnp.float32),  # logvar(padded)
    )
    recon_p, mu_p, logvar_p = pl.pallas_call(
        kernel,
        out_shape=out_shapes,
        in_specs=[pl.BlockSpec(memory_space=vmem)] * len(inputs),
        out_specs=tuple(pl.BlockSpec(memory_space=vmem) for _ in range(3)),
    )(*inputs)

    return (
        recon_p[:M, :input_dim],
        mu_p[:M, :latent_dim],
        logvar_p[:M, :latent_dim],
    )


# ---------------------------------------------------------------------------
if __name__ == "__main__":
    key = jax.random.PRNGKey(0)
    k_params, k_x, k_eps = jax.random.split(key, 3)

    batch = 16
    input_dim = 32
    hidden_dims = [64, 48]
    latent_dim = 16

    raw_params = init_vae_params(k_params, input_dim, hidden_dims, latent_dim)
    padded_params = pad_params(raw_params, input_dim, hidden_dims, latent_dim)

    x = jax.random.normal(k_x, (batch, input_dim), jnp.float32)
    # eps ~ N(0, 1), generated once (torch.randn_like equivalent, deterministic).
    eps = jax.random.normal(k_eps, (batch, latent_dim), jnp.float32)

    fwd = jax.jit(lambda xx, ee: vae_forward(padded_params, xx, ee))
    recon, mu, logvar = fwd(x, eps)
    jax.block_until_ready((recon, mu, logvar))

    # Sanity check against a pure-JAX reference on the unpadded parameters.
    def ref_forward(params, x, eps, slope=0.01):
        def lin(h, wb, act):
            y = h @ wb[0] + wb[1]
            return jnp.where(y >= 0, y, slope * y) if act else y
        h = x
        for wb in params["encoder"]:
            h = lin(h, wb, True)
        mu_r = lin(h, params["fc_mu"], False)
        lv_r = lin(h, params["fc_logvar"], False)
        z = mu_r + eps * jnp.exp(0.5 * lv_r)
        d = z
        for wb in params["decoder"]:
            d = lin(d, wb, True)
        return lin(d, params["decoder_out"], False), mu_r, lv_r

    r_ref, mu_ref, lv_ref = ref_forward(raw_params, x, eps)
    assert jnp.allclose(recon, r_ref, atol=1e-4, rtol=1e-4)
    assert jnp.allclose(mu, mu_ref, atol=1e-4, rtol=1e-4)
    assert jnp.allclose(logvar, lv_ref, atol=1e-4, rtol=1e-4)

    print("KERNEL_OK")
</pallas_src>

<mosaic_0001>
module attributes {stable_mosaic.version = 11 : i64} {
  func.func @kernel(%arg0: memref<16x128xf32, #tpu.memory_space<vmem>>, %arg1: memref<16x128xf32, #tpu.memory_space<vmem>>, %arg2: memref<128x128xf32, #tpu.memory_space<vmem>>, %arg3: memref<1x128xf32, #tpu.memory_space<vmem>>, %arg4: memref<128x128xf32, #tpu.memory_space<vmem>>, %arg5: memref<1x128xf32, #tpu.memory_space<vmem>>, %arg6: memref<128x256xf32, #tpu.memory_space<vmem>>, %arg7: memref<1x256xf32, #tpu.memory_space<vmem>>, %arg8: memref<128x128xf32, #tpu.memory_space<vmem>>, %arg9: memref<1x128xf32, #tpu.memory_space<vmem>>, %arg10: memref<128x128xf32, #tpu.memory_space<vmem>>, %arg11: memref<1x128xf32, #tpu.memory_space<vmem>>, %arg12: memref<128x128xf32, #tpu.memory_space<vmem>>, %arg13: memref<1x128xf32, #tpu.memory_space<vmem>>, %arg14: memref<16x128xf32, #tpu.memory_space<vmem>>, %arg15: memref<16x128xf32, #tpu.memory_space<vmem>>, %arg16: memref<16x128xf32, #tpu.memory_space<vmem>>) attributes {dimension_semantics = [], scalar_prefetch = 0 : i64, scratch_operands = 0 : i64, tpu.core_type = #tpu.core_type<tc>} {
    %c0 = arith.constant 0 : index
    %c0_0 = arith.constant 0 : index
    %0 = vector.load %arg0[%c0, %c0_0] : memref<16x128xf32, #tpu.memory_space<vmem>>, vector<16x128xf32>
    %c0_1 = arith.constant 0 : index
    %c0_2 = arith.constant 0 : index
    %1 = vector.load %arg2[%c0_1, %c0_2] : memref<128x128xf32, #tpu.memory_space<vmem>>, vector<128x128xf32>
    %cst = arith.constant dense<0.000000e+00> : vector<16x128xf32>
    %2 = tpu.matmul %0, %1, %cst {dimension_numbers = #tpu.dot_dimension_numbers<[1], [0], [0], [1], [0, 0, 1, 1], [], []>} : vector<16x128xf32>, vector<128x128xf32>, vector<16x128xf32> -> vector<16x128xf32>
    %c0_3 = arith.constant 0 : index
    %c0_4 = arith.constant 0 : index
    %3 = vector.load %arg3[%c0_3, %c0_4] : memref<1x128xf32, #tpu.memory_space<vmem>>, vector<1x128xf32>
    %4 = vector.broadcast %3 : vector<1x128xf32> to vector<16x128xf32>
    %5 = arith.addf %2, %4 : vector<16x128xf32>
    %cst_5 = arith.constant 0.000000e+00 : f32
    %6 = vector.broadcast %cst_5 : f32 to vector<16x128xf32>
    %7 = arith.cmpf oge, %5, %6 : vector<16x128xf32>
    %cst_6 = arith.constant 0.00999999977 : f32
    %8 = vector.broadcast %cst_6 : f32 to vector<16x128xf32>
    %9 = arith.mulf %8, %5 : vector<16x128xf32>
    %10 = arith.select %7, %5, %9 : vector<16x128xi1>, vector<16x128xf32>
    %c0_7 = arith.constant 0 : index
    %c0_8 = arith.constant 0 : index
    %11 = vector.load %arg4[%c0_7, %c0_8] : memref<128x128xf32, #tpu.memory_space<vmem>>, vector<128x128xf32>
    %cst_9 = arith.constant dense<0.000000e+00> : vector<16x128xf32>
    %12 = tpu.matmul %10, %11, %cst_9 {dimension_numbers = #tpu.dot_dimension_numbers<[1], [0], [0], [1], [0, 0, 1, 1], [], []>} : vector<16x128xf32>, vector<128x128xf32>, vector<16x128xf32> -> vector<16x128xf32>
    %c0_10 = arith.constant 0 : index
    %c0_11 = arith.constant 0 : index
    %13 = vector.load %arg5[%c0_10, %c0_11] : memref<1x128xf32, #tpu.memory_space<vmem>>, vector<1x128xf32>
    %14 = vector.broadcast %13 : vector<1x128xf32> to vector<16x128xf32>
    %15 = arith.addf %12, %14 : vector<16x128xf32>
    %cst_12 = arith.constant 0.000000e+00 : f32
    %16 = vector.broadcast %cst_12 : f32 to vector<16x128xf32>
    %17 = arith.cmpf oge, %15, %16 : vector<16x128xf32>
    %cst_13 = arith.constant 0.00999999977 : f32
    %18 = vector.broadcast %cst_13 : f32 to vector<16x128xf32>
    %19 = arith.mulf %18, %15 : vector<16x128xf32>
    %20 = arith.select %17, %15, %19 : vector<16x128xi1>, vector<16x128xf32>
    %c0_14 = arith.constant 0 : index
    %c0_15 = arith.constant 0 : index
    %21 = vector.load %arg6[%c0_14, %c0_15] : memref<128x256xf32, #tpu.memory_space<vmem>>, vector<128x256xf32>
    %cst_16 = arith.constant dense<0.000000e+00> : vector<16x256xf32>
    %22 = tpu.matmul %20, %21, %cst_16 {dimension_numbers = #tpu.dot_dimension_numbers<[1], [0], [0], [1], [0, 0, 1, 1], [], []>} : vector<16x128xf32>, vector<128x256xf32>, vector<16x256xf32> -> vector<16x256xf32>
    %c0_17 = arith.constant 0 : index
    %c0_18 = arith.constant 0 : index
    %23 = vector.load %arg7[%c0_17, %c0_18] : memref<1x256xf32, #tpu.memory_space<vmem>>, vector<1x256xf32>
    %24 = vector.broadcast %23 : vector<1x256xf32> to vector<16x256xf32>
    %25 = arith.addf %22, %24 : vector<16x256xf32>
    %26 = vector.extract_strided_slice %25 {offsets = [0, 0], sizes = [16, 128], strides = [1, 1]} : vector<16x256xf32> to vector<16x128xf32>
    %27 = vector.extract_strided_slice %25 {offsets = [0, 128], sizes = [16, 128], strides = [1, 1]} : vector<16x256xf32> to vector<16x128xf32>
    %c0_19 = arith.constant 0 : index
    %c0_20 = arith.constant 0 : index
    %28 = vector.load %arg15[%c0_19, %c0_20] : memref<16x128xf32, #tpu.memory_space<vmem>>, vector<16x128xf32>
    tpu.vector_store %arg15[%c0_19, %c0_20], %26 {strides = array<i32>} : memref<16x128xf32, #tpu.memory_space<vmem>>, vector<16x128xf32>,
    %c0_21 = arith.constant 0 : index
    %c0_22 = arith.constant 0 : index
    %29 = vector.load %arg16[%c0_21, %c0_22] : memref<16x128xf32, #tpu.memory_space<vmem>>, vector<16x128xf32>
    tpu.vector_store %arg16[%c0_21, %c0_22], %27 {strides = array<i32>} : memref<16x128xf32, #tpu.memory_space<vmem>>, vector<16x128xf32>,
    %c0_23 = arith.constant 0 : index
    %c0_24 = arith.constant 0 : index
    %30 = vector.load %arg1[%c0_23, %c0_24] : memref<16x128xf32, #tpu.memory_space<vmem>>, vector<16x128xf32>
    %cst_25 = arith.constant 5.000000e-01 : f32
    %31 = vector.broadcast %cst_25 : f32 to vector<16x128xf32>
    %32 = arith.mulf %31, %27 : vector<16x128xf32>
    %33 = math.exp %32 : vector<16x128xf32>
    %34 = arith.mulf %30, %33 : vector<16x128xf32>
    %35 = arith.addf %26, %34 : vector<16x128xf32>
    %c0_26 = arith.constant 0 : index
    %c0_27 = arith.constant 0 : index
    %36 = vector.load %arg8[%c0_26, %c0_27] : memref<128x128xf32, #tpu.memory_space<vmem>>, vector<128x128xf32>
    %cst_28 = arith.constant dense<0.000000e+00> : vector<16x128xf32>
    %37 = tpu.matmul %35, %36, %cst_28 {dimension_numbers = #tpu.dot_dimension_numbers<[1], [0], [0], [1], [0, 0, 1, 1], [], []>} : vector<16x128xf32>, vector<128x128xf32>, vector<16x128xf32> -> vector<16x128xf32>
    %c0_29 = arith.constant 0 : index
    %c0_30 = arith.constant 0 : index
    %38 = vector.load %arg9[%c0_29, %c0_30] : memref<1x128xf32, #tpu.memory_space<vmem>>, vector<1x128xf32>
    %39 = vector.broadcast %38 : vector<1x128xf32> to vector<16x128xf32>
    %40 = arith.addf %37, %39 : vector<16x128xf32>
    %cst_31 = arith.constant 0.000000e+00 : f32
    %41 = vector.broadcast %cst_31 : f32 to vector<16x128xf32>
    %42 = arith.cmpf oge, %40, %41 : vector<16x128xf32>
    %cst_32 = arith.constant 0.00999999977 : f32
    %43 = vector.broadcast %cst_32 : f32 to vector<16x128xf32>
    %44 = arith.mulf %43, %40 : vector<16x128xf32>
    %45 = arith.select %42, %40, %44 : vector<16x128xi1>, vector<16x128xf32>
    %c0_33 = arith.constant 0 : index
    %c0_34 = arith.constant 0 : index
    %46 = vector.load %arg10[%c0_33, %c0_34] : memref<128x128xf32, #tpu.memory_space<vmem>>, vector<128x128xf32>
    %cst_35 = arith.constant dense<0.000000e+00> : vector<16x128xf32>
    %47 = tpu.matmul %45, %46, %cst_35 {dimension_numbers = #tpu.dot_dimension_numbers<[1], [0], [0], [1], [0, 0, 1, 1], [], []>} : vector<16x128xf32>, vector<128x128xf32>, vector<16x128xf32> -> vector<16x128xf32>
    %c0_36 = arith.constant 0 : index
    %c0_37 = arith.constant 0 : index
    %48 = vector.load %arg11[%c0_36, %c0_37] : memref<1x128xf32, #tpu.memory_space<vmem>>, vector<1x128xf32>
    %49 = vector.broadcast %48 : vector<1x128xf32> to vector<16x128xf32>
    %50 = arith.addf %47, %49 : vector<16x128xf32>
    %cst_38 = arith.constant 0.000000e+00 : f32
    %51 = vector.broadcast %cst_38 : f32 to vector<16x128xf32>
    %52 = arith.cmpf oge, %50, %51 : vector<16x128xf32>
    %cst_39 = arith.constant 0.00999999977 : f32
    %53 = vector.broadcast %cst_39 : f32 to vector<16x128xf32>
    %54 = arith.mulf %53, %50 : vector<16x128xf32>
    %55 = arith.select %52, %50, %54 : vector<16x128xi1>, vector<16x128xf32>
    %c0_40 = arith.constant 0 : index
    %c0_41 = arith.constant 0 : index
    %56 = vector.load %arg12[%c0_40, %c0_41] : memref<128x128xf32, #tpu.memory_space<vmem>>, vector<128x128xf32>
    %cst_42 = arith.constant dense<0.000000e+00> : vector<16x128xf32>
    %57 = tpu.matmul %55, %56, %cst_42 {dimension_numbers = #tpu.dot_dimension_numbers<[1], [0], [0], [1], [0, 0, 1, 1], [], []>} : vector<16x128xf32>, vector<128x128xf32>, vector<16x128xf32> -> vector<16x128xf32>
    %c0_43 = arith.constant 0 : index
    %c0_44 = arith.constant 0 : index
    %58 = vector.load %arg13[%c0_43, %c0_44] : memref<1x128xf32, #tpu.memory_space<vmem>>, vector<1x128xf32>
    %59 = vector.broadcast %58 : vector<1x128xf32> to vector<16x128xf32>
    %60 = arith.addf %57, %59 : vector<16x128xf32>
    %c0_45 = arith.constant 0 : index
    %c0_46 = arith.constant 0 : index
    %61 = vector.load %arg14[%c0_45, %c0_46] : memref<16x128xf32, #tpu.memory_space<vmem>>, vector<16x128xf32>
    tpu.vector_store %arg14[%c0_45, %c0_46], %60 {strides = array<i32>} : memref<16x128xf32, #tpu.memory_space<vmem>>, vector<16x128xf32>,
    return
  }
}

</mosaic_0001>

<llo_original>
// kernel: _lambda_.1
$region0: #{_lambda_.1}
  #allocation0 [shape = 'u32[]', space=smem, size = 0x4, offset = 0x4, fixed_abs, tag = 'smem constant byte address 0x4 - core index']
  #allocation1 [shape = 'u32[144,128]{1,0:T(1,128)}', space=vmem, size = 0x12000, scoped, tag = 'internal scratch']
  %s0 = inlined_call_operand.vmem [shape: f32[16,128], index: 0, kind: input, shape index: {}]
  %s1 = inlined_call_operand.vmem [shape: f32[16,128], index: 1, kind: input, shape index: {}]
  %s2 = inlined_call_operand.hbm [shape: f32[128,128], index: 2, kind: input, shape index: {}]
  %s3 = inlined_call_operand.vmem [shape: f32[1,128], index: 3, kind: input, shape index: {}]
  %s4 = inlined_call_operand.hbm [shape: f32[128,128], index: 4, kind: input, shape index: {}]
  %s5 = inlined_call_operand.vmem [shape: f32[1,128], index: 5, kind: input, shape index: {}]
  %s6 = inlined_call_operand.hbm [shape: f32[128,256], index: 6, kind: input, shape index: {}]
  %s7 = inlined_call_operand.vmem [shape: f32[1,256], index: 7, kind: input, shape index: {}]
  %s8 = inlined_call_operand.hbm [shape: f32[128,128], index: 8, kind: input, shape index: {}]
  %s9 = inlined_call_operand.vmem [shape: f32[1,128], index: 9, kind: input, shape index: {}]
  %s10 = inlined_call_operand.hbm [shape: f32[128,128], index: 10, kind: input, shape index: {}]
  %s11 = inlined_call_operand.vmem [shape: f32[1,128], index: 11, kind: input, shape index: {}]
  %s12 = inlined_call_operand.vmem [shape: f32[128,128], index: 12, kind: input, shape index: {}]
  %s13 = inlined_call_operand.vmem [shape: f32[1,128], index: 13, kind: input, shape index: {}]
  %s14 = inlined_call_operand.hbm [shape: f32[16,128], index: 14, kind: output, shape index: {0}]
  %s15 = inlined_call_operand.hbm [shape: f32[16,128], index: 15, kind: output, shape index: {1}]
  %s16 = inlined_call_operand.hbm [shape: f32[16,128], index: 16, kind: output, shape index: {2}]
  %17 = xla_tuple %s14, %s15, %s16
  %s18 = sld [smem:[#allocation0]]
  $region102: #{_lambda_.1} parent=0
    _
  %s20 = ssub.s32 1, %s18
  %s21 = scalar_select 0, %s20, %s18
  $region1: #{_lambda_.1} parent=0
    #allocation2 [shape = 'u8[65536]{0}', space=vmem, size = 0x10000, scoped, tag = 'input window, operand 2, single buffered']
    #allocation3 [shape = 's32[1]{0}', space=sflag, size = 0x4, scoped, tag = 'scoped memory for _lambda_.1']
    #allocation4 [shape = 's32[1]{0}', space=sflag, size = 0x4, scoped, tag = 'scoped memory for _lambda_.1']
    #allocation5 [shape = 'u8[65536]{0}', space=vmem, size = 0x10000, scoped, tag = 'input window, operand 4, single buffered']
    #allocation6 [shape = 's32[1]{0}', space=sflag, size = 0x4, scoped, tag = 'scoped memory for _lambda_.1']
    #allocation7 [shape = 'u8[131072]{0}', space=vmem, size = 0x20000, scoped, tag = 'input window, operand 6, single buffered']
    #allocation8 [shape = 'u8[65536]{0}', space=vmem, size = 0x10000, scoped, tag = 'input window, operand 8, single buffered']
    #allocation9 [shape = 's32[1]{0}', space=sflag, size = 0x4, scoped, tag = 'scoped memory for _lambda_.1']
    #allocation10 [shape = 'u8[65536]{0}', space=vmem, size = 0x10000, scoped, tag = 'input window, operand 10, single buffered']
    #allocation11 [shape = 'u8[8192]{0}', space=vmem, size = 0x2000, scoped, tag = 'output window, operand 0, single buffered']
    #allocation12 [shape = 'u8[8192]{0}', space=vmem, size = 0x2000, scoped, tag = 'output window, operand 1, single buffered']
    #allocation13 [shape = 's32[1]{0}', space=sflag, size = 0x4, scoped, tag = 'scoped memory for _lambda_.1']
    #allocation14 [shape = 'u8[8192]{0}', space=vmem, size = 0x2000, scoped, tag = 'output window, operand 2, single buffered']
    %22 = vsyncpa [#allocation3], 0
    %23 = vsyncpa [#allocation6], 0
    %24 = vsyncpa [#allocation9], 0
    %25 = vsyncpa [#allocation4], 0
    %26 = vsyncpa [#allocation13], 0
    // Predicated region
    $region2: #{_lambda_.1} parent=1 // pred_check
      _
    $region3: #{_lambda_.1} parent=1 // pred_check_branch
      %28 = sbr.rel (0) target = $region5
    $region4: #{_lambda_.1} parent=1 // pred_region
      _
    $region5: #{_lambda_.1} parent=1 // pred_fallthru
      _
    // Predicated region
    $region6: #{_lambda_.1} parent=1 // pred_check
      _
    $region7: #{_lambda_.1} parent=1 // pred_check_branch
      %30 = sbr.rel (0) target = $region9
    $region8: #{_lambda_.1} parent=1 // pred_region
      _
    $region9: #{_lambda_.1} parent=1 // pred_fallthru
      _
    // Predicated region
    $region10: #{_lambda_.1} parent=1 // pred_check
      _
    $region11: #{_lambda_.1} parent=1 // pred_check_branch
      %32 = sbr.rel (0) target = $region13
    $region12: #{_lambda_.1} parent=1 // pred_region
      %s34 = ssub.s32 2048, 2048
      %35 = vsyncadd [#allocation3], %s34
      %s36 = sshll.u32 [#allocation2], 4
      %s37 = int_to_ptr.vmem [resolvable:$true] %s36
      %42 = dma.hbm_to_vmem [thread:$0]  %s2, 2048, %s37, [#allocation3], 128, 128, 8
    $region13: #{_lambda_.1} parent=1 // pred_fallthru
      _
    // Predicated region
    $region14: #{_lambda_.1} parent=1 // pred_check
      _
    $region15: #{_lambda_.1} parent=1 // pred_check_branch
      %44 = sbr.rel (0) target = $region17
    $region16: #{_lambda_.1} parent=1 // pred_region
      _
    $region17: #{_lambda_.1} parent=1 // pred_fallthru
      _
    // Predicated region
    $region18: #{_lambda_.1} parent=1 // pred_check
      _
    $region19: #{_lambda_.1} parent=1 // pred_check_branch
      %46 = sbr.rel (0) target = $region21
    $region20: #{_lambda_.1} parent=1 // pred_region
      %s48 = ssub.s32 2048, 2048
      %49 = vsyncadd [#allocation6], %s48
      %s50 = sshll.u32 [#allocation5], 4
      %s51 = int_to_ptr.vmem [resolvable:$true] %s50
      %56 = dma.hbm_to_vmem [thread:$0]  %s4, 2048, %s51, [#allocation6], 128, 128, 8
    $region21: #{_lambda_.1} parent=1 // pred_fallthru
      _
    // Predicated region
    $region22: #{_lambda_.1} parent=1 // pred_check
      _
    $region23: #{_lambda_.1} parent=1 // pred_check_branch
      %58 = sbr.rel (0) target = $region25
    $region24: #{_lambda_.1} parent=1 // pred_region
      _
    $region25: #{_lambda_.1} parent=1 // pred_fallthru
      _
    // Predicated region
    $region26: #{_lambda_.1} parent=1 // pred_check
      _
    $region27: #{_lambda_.1} parent=1 // pred_check_branch
      %60 = sbr.rel (0) target = $region29
    $region28: #{_lambda_.1} parent=1 // pred_region
      %s62 = ssub.s32 4096, 4096
      %63 = vsyncadd [#allocation6], %s62
      %s64 = sshll.u32 [#allocation7], 4
      %s65 = int_to_ptr.vmem [resolvable:$true] %s64
      %70 = dma.hbm_to_vmem [thread:$0]  %s6, 4096, %s65, [#allocation6], 256, 256, 16
    $region29: #{_lambda_.1} parent=1 // pred_fallthru
      _
    // Predicated region
    $region30: #{_lambda_.1} parent=1 // pred_check
      _
    $region31: #{_lambda_.1} parent=1 // pred_check_branch
      %72 = sbr.rel (0) target = $region33
    $region32: #{_lambda_.1} parent=1 // pred_region
      _
    $region33: #{_lambda_.1} parent=1 // pred_fallthru
      _
    // Predicated region
    $region34: #{_lambda_.1} parent=1 // pred_check
      _
    $region35: #{_lambda_.1} parent=1 // pred_check_branch
      %74 = sbr.rel (0) target = $region37
    $region36: #{_lambda_.1} parent=1 // pred_region
      %s76 = ssub.s32 2048, 2048
      %77 = vsyncadd [#allocation9], %s76
      %s78 = sshll.u32 [#allocation8], 4
      %s79 = int_to_ptr.vmem [resolvable:$true] %s78
      %84 = dma.hbm_to_vmem [thread:$0]  %s8, 2048, %s79, [#allocation9], 128, 128, 8
    $region37: #{_lambda_.1} parent=1 // pred_fallthru
      _
    // Predicated region
    $region38: #{_lambda_.1} parent=1 // pred_check
      _
    $region39: #{_lambda_.1} parent=1 // pred_check_branch
      %86 = sbr.rel (0) target = $region41
    $region40: #{_lambda_.1} parent=1 // pred_region
      _
    $region41: #{_lambda_.1} parent=1 // pred_fallthru
      _
    // Predicated region
    $region42: #{_lambda_.1} parent=1 // pred_check
      _
    $region43: #{_lambda_.1} parent=1 // pred_check_branch
      %88 = sbr.rel (0) target = $region45
    $region44: #{_lambda_.1} parent=1 // pred_region
      %s90 = ssub.s32 2048, 2048
      %91 = vsyncadd [#allocation9], %s90
      %s92 = sshll.u32 [#allocation10], 4
      %s93 = int_to_ptr.vmem [resolvable:$true] %s92
      %98 = dma.hbm_to_vmem [thread:$0]  %s10, 2048, %s93, [#allocation9], 128, 128, 8
    $region45: #{_lambda_.1} parent=1 // pred_fallthru
      _
    // Predicated region
    $region46: #{_lambda_.1} parent=1 // pred_check
      _
    $region47: #{_lambda_.1} parent=1 // pred_check_branch
      %100 = sbr.rel (0) target = $region49
    $region48: #{_lambda_.1} parent=1 // pred_region
      _
    $region49: #{_lambda_.1} parent=1 // pred_fallthru
      _
    // Predicated region
    $region50: #{_lambda_.1} parent=1 // pred_check
      _
    $region51: #{_lambda_.1} parent=1 // pred_check_branch
      %102 = sbr.rel (0) target = $region53
    $region52: #{_lambda_.1} parent=1 // pred_region
      _
    $region53: #{_lambda_.1} parent=1 // pred_fallthru
      _
    // Predicated region
    $region54: #{_lambda_.1} parent=1 // pred_check
      _
    $region55: #{_lambda_.1} parent=1 // pred_check_branch
      %104 = sbr.rel (0) target = $region57
    $region56: #{_lambda_.1} parent=1 // pred_region
      _
    $region57: #{_lambda_.1} parent=1 // pred_fallthru
      _
    // Predicated region
    $region58: #{_lambda_.1} parent=1 // pred_check
      _
    $region59: #{_lambda_.1} parent=1 // pred_check_branch
      %106 = sbr.rel (0) target = $region61
    $region60: #{_lambda_.1} parent=1 // pred_region
      %107 = dma.done [#allocation3], 2048
    $region61: #{_lambda_.1} parent=1 // pred_fallthru
      _
    // Predicated region
    $region62: #{_lambda_.1} parent=1 // pred_check
      _
    $region63: #{_lambda_.1} parent=1 // pred_check_branch
      %109 = sbr.rel (0) target = $region65
    $region64: #{_lambda_.1} parent=1 // pred_region
      %110 = dma.done [#allocation6], 2048
    $region65: #{_lambda_.1} parent=1 // pred_fallthru
      _
    // Predicated region
    $region66: #{_lambda_.1} parent=1 // pred_check
      _
    $region67: #{_lambda_.1} parent=1 // pred_check_branch
      %112 = sbr.rel (0) target = $region69
    $region68: #{_lambda_.1} parent=1 // pred_region
      %113 = dma.done [#allocation6], 4096
    $region69: #{_lambda_.1} parent=1 // pred_fallthru
      _
    // Predicated region
    $region70: #{_lambda_.1} parent=1 // pred_check
      _
    $region71: #{_lambda_.1} parent=1 // pred_check_branch
      %115 = sbr.rel (0) target = $region73
    $region72: #{_lambda_.1} parent=1 // pred_region
      %116 = dma.done [#allocation9], 2048
    $region73: #{_lambda_.1} parent=1 // pred_fallthru
      _
    // Predicated region
    $region74: #{_lambda_.1} parent=1 // pred_check
      _
    $region75: #{_lambda_.1} parent=1 // pred_check_branch
      %118 = sbr.rel (0) target = $region77
    $region76: #{_lambda_.1} parent=1 // pred_region
      %119 = dma.done [#allocation9], 2048
    $region77: #{_lambda_.1} parent=1 // pred_fallthru
      _
    %v120 = vld [vmem:[%s0] sm:$0xff]
    %v121 = vld [vmem:[%s0 + $0x8] sm:$0xff]
    %v122 = vld [vmem:[#allocation2] sm:$0xff]
    %v123 = vld [vmem:[#allocation2 + $0x8] sm:$0xff]
    %v124 = vld [vmem:[#allocation2 + $0x10] sm:$0xff]
    %v125 = vld [vmem:[#allocation2 + $0x18] sm:$0xff]
    %v126 = vld [vmem:[#allocation2 + $0x20] sm:$0xff]
    %v127 = vld [vmem:[#allocation2 + $0x28] sm:$0xff]
    %v128 = vld [vmem:[#allocation2 + $0x30] sm:$0xff]
    %v129 = vld [vmem:[#allocation2 + $0x38] sm:$0xff]
    %v130 = vld [vmem:[#allocation2 + $0x40] sm:$0xff]
    %v131 = vld [vmem:[#allocation2 + $0x48] sm:$0xff]
    %v132 = vld [vmem:[#allocation2 + $0x50] sm:$0xff]
    %v133 = vld [vmem:[#allocation2 + $0x58] sm:$0xff]
    %v134 = vld [vmem:[#allocation2 + $0x60] sm:$0xff]
    %v135 = vld [vmem:[#allocation2 + $0x68] sm:$0xff]
    %v136 = vld [vmem:[#allocation2 + $0x70] sm:$0xff]
    %v137 = vld [vmem:[#allocation2 + $0x78] sm:$0xff]
    %v138 = vld [vmem:[%s3] sm:$0x1]
    %v140 = vlaneseq
    %v141 = vshrl.u32 %v140, 7
    %v142 = vsub.s32 0, %v141
    %v143 = vrot.slane %v138, %v142
    %145 = vmatprep.subr.mxu0 0.0
    %146 = vmatpush1.msra.mxu0 %v122
    %147 = vmatprep.subr.mxu0 0.0
    %148 = vmatpush1.msra.mxu0 %v123
    %149 = vmatprep.subr.mxu0 0.0
    %150 = vmatpush1.msra.mxu0 %v124
    %151 = vmatprep.subr.mxu0 0.0
    %152 = vmatpush1.msra.mxu0 %v125
    %153 = vmatprep.subr.mxu0 0.0
    %154 = vmatpush1.msra.mxu0 %v126
    %155 = vmatprep.subr.mxu0 0.0
    %156 = vmatpush1.msra.mxu0 %v127
    %157 = vmatprep.subr.mxu0 0.0
    %158 = vmatpush1.msra.mxu0 %v128
    %159 = vmatprep.subr.mxu0 0.0
    %160 = vmatpush1.msra.mxu0 %v129
    %161 = vmatprep.subr.mxu0 0.0
    %162 = vmatpush1.msra.mxu0 %v130
    %163 = vmatprep.subr.mxu0 0.0
    %164 = vmatpush1.msra.mxu0 %v131
    %165 = vmatprep.subr.mxu0 0.0
    %166 = vmatpush1.msra.mxu0 %v132
    %167 = vmatprep.subr.mxu0 0.0
    %168 = vmatpush1.msra.mxu0 %v133
    %169 = vmatprep.subr.mxu0 0.0
    %170 = vmatpush1.msra.mxu0 %v134
    %171 = vmatprep.subr.mxu0 0.0
    %172 = vmatpush1.msra.mxu0 %v135
    %173 = vmatprep.subr.mxu0 0.0
    %174 = vmatpush1.msra.mxu0 %v136
    %175 = vmatprep.subr.mxu0 0.0
    %176 = vmatpush1.msra.mxu0 %v137
    %177 = vmatprep.subr.mxu0 0.0
    %178 = vmatpush1.msra.mxu0 0.0
    %179 = vmatprep.subr.mxu0 0.0
    %180 = vmatpush1.msra.mxu0 0.0
    %181 = vmatprep.subr.mxu0 0.0
    %182 = vmatpush1.msra.mxu0 0.0
    %183 = vmatprep.subr.mxu0 0.0
    %184 = vmatpush1.msra.mxu0 0.0
    %185 = vmatprep.subr.mxu0 0.0
    %186 = vmatpush1.msra.mxu0 0.0
    %187 = vmatprep.subr.mxu0 0.0
    %188 = vmatpush1.msra.mxu0 0.0
    %189 = vmatprep.subr.mxu0 0.0
    %190 = vmatpush1.msra.mxu0 0.0
    %191 = vmatprep.subr.mxu0 0.0
    %192 = vmatpush1.msra.mxu0 0.0
    %193 = vmatprep.subr.mxu0 0.0
    %194 = vmatpush1.msra.mxu0 0.0
    %195 = vmatprep.subr.mxu0 0.0
    %196 = vmatpush1.msra.mxu0 0.0
    %197 = vmatprep.subr.mxu0 0.0
    %198 = vmatpush1.msra.mxu0 0.0
    %199 = vmatprep.subr.mxu0 0.0
    %200 = vmatpush1.msra.mxu0 0.0
    %201 = vmatprep.subr.mxu0 0.0
    %202 = vmatpush1.msra.mxu0 0.0
    %203 = vmatprep.subr.mxu0 0.0
    %204 = vmatpush1.msra.mxu0 0.0
    %205 = vmatprep.subr.mxu0 0.0
    %206 = vmatpush1.msra.mxu0 0.0
    %207 = vmatprep.subr.mxu0 0.0
    %208 = vmatpush1.msra.mxu0 0.0
    %209 = vmatprep.mubr.f32.mxu0 0.0
    %210 = vmatmul.mubr.f32.gmra.mrb[0].mxu0 %v120
    %v211 = vpop.f32.mrb[0].mxu0
    %v212 = vadd.f32 %v143, %v211
    %v213 = vpop.f32.mrb[0].mxu0
    %214 = vmatprep.mubr.f32.mxu0 0.0
    %215 = vmatmul.mubr.f32.gmra.mrb[0].mxu0 %v121
    %v216 = vpop.f32.mrb[0].mxu0
    %v217 = vadd.f32 %v143, %v216
    %v218 = vpop.f32.mrb[0].mxu0
    %219 = vdwg.mxu0
    %vm220 = vcmp.ge.f32.partialorder %v212, 0.0
    %vm221 = vcmp.ge.f32.partialorder %v217, 0.0
    %v222 = vmul.f32 %v212, 0.01
    %v223 = vmul.f32 %v217, 0.01
    %v224 = vsel %vm220, %v212, %v222
    %v225 = vsel %vm221, %v217, %v223
    %v226 = vld [vmem:[#allocation5] sm:$0xff]
    %v227 = vld [vmem:[#allocation5 + $0x8] sm:$0xff]
    %v228 = vld [vmem:[#allocation5 + $0x10] sm:$0xff]
    %v229 = vld [vmem:[#allocation5 + $0x18] sm:$0xff]
    %v230 = vld [vmem:[#allocation5 + $0x20] sm:$0xff]
    %v231 = vld [vmem:[#allocation5 + $0x28] sm:$0xff]
    %v232 = vld [vmem:[#allocation5 + $0x30] sm:$0xff]
    %v233 = vld [vmem:[#allocation5 + $0x38] sm:$0xff]
    %v234 = vld [vmem:[#allocation5 + $0x40] sm:$0xff]
    %v235 = vld [vmem:[#allocation5 + $0x48] sm:$0xff]
    %v236 = vld [vmem:[#allocation5 + $0x50] sm:$0xff]
    %v237 = vld [vmem:[#allocation5 + $0x58] sm:$0xff]
    %v238 = vld [vmem:[#allocation5 + $0x60] sm:$0xff]
    %v239 = vld [vmem:[#allocation5 + $0x68] sm:$0xff]
    %v240 = vld [vmem:[#allocation5 + $0x70] sm:$0xff]
    %v241 = vld [vmem:[#allocation5 + $0x78] sm:$0xff]
    %v242 = vld [vmem:[%s5] sm:$0x1]
    %v244 = vlaneseq
    %v245 = vshrl.u32 %v244, 7
    %v246 = vsub.s32 0, %v245
    %v247 = vrot.slane %v242, %v246
    %249 = vmatprep.subr.mxu0 0.0
    %250 = vmatpush1.msra.mxu0 %v226
    %251 = vmatprep.subr.mxu0 0.0
    %252 = vmatpush1.msra.mxu0 %v227
    %253 = vmatprep.subr.mxu0 0.0
    %254 = vmatpush1.msra.mxu0 %v228
    %255 = vmatprep.subr.mxu0 0.0
    %256 = vmatpush1.msra.mxu0 %v229
    %257 = vmatprep.subr.mxu0 0.0
    %258 = vmatpush1.msra.mxu0 %v230
    %259 = vmatprep.subr.mxu0 0.0
    %260 = vmatpush1.msra.mxu0 %v231
    %261 = vmatprep.subr.mxu0 0.0
    %262 = vmatpush1.msra.mxu0 %v232
    %263 = vmatprep.subr.mxu0 0.0
    %264 = vmatpush1.msra.mxu0 %v233
    %265 = vmatprep.subr.mxu0 0.0
    %266 = vmatpush1.msra.mxu0 %v234
    %267 = vmatprep.subr.mxu0 0.0
    %268 = vmatpush1.msra.mxu0 %v235
    %269 = vmatprep.subr.mxu0 0.0
    %270 = vmatpush1.msra.mxu0 %v236
    %271 = vmatprep.subr.mxu0 0.0
    %272 = vmatpush1.msra.mxu0 %v237
    %273 = vmatprep.subr.mxu0 0.0
    %274 = vmatpush1.msra.mxu0 %v238
    %275 = vmatprep.subr.mxu0 0.0
    %276 = vmatpush1.msra.mxu0 %v239
    %277 = vmatprep.subr.mxu0 0.0
    %278 = vmatpush1.msra.mxu0 %v240
    %279 = vmatprep.subr.mxu0 0.0
    %280 = vmatpush1.msra.mxu0 %v241
    %281 = vmatprep.subr.mxu0 0.0
    %282 = vmatpush1.msra.mxu0 0.0
    %283 = vmatprep.subr.mxu0 0.0
    %284 = vmatpush1.msra.mxu0 0.0
    %285 = vmatprep.subr.mxu0 0.0
    %286 = vmatpush1.msra.mxu0 0.0
    %287 = vmatprep.subr.mxu0 0.0
    %288 = vmatpush1.msra.mxu0 0.0
    %289 = vmatprep.subr.mxu0 0.0
    %290 = vmatpush1.msra.mxu0 0.0
    %291 = vmatprep.subr.mxu0 0.0
    %292 = vmatpush1.msra.mxu0 0.0
    %293 = vmatprep.subr.mxu0 0.0
    %294 = vmatpush1.msra.mxu0 0.0
    %295 = vmatprep.subr.mxu0 0.0
    %296 = vmatpush1.msra.mxu0 0.0
    %297 = vmatprep.subr.mxu0 0.0
    %298 = vmatpush1.msra.mxu0 0.0
    %299 = vmatprep.subr.mxu0 0.0
    %300 = vmatpush1.msra.mxu0 0.0
    %301 = vmatprep.subr.mxu0 0.0
    %302 = vmatpush1.msra.mxu0 0.0
    %303 = vmatprep.subr.mxu0 0.0
    %304 = vmatpush1.msra.mxu0 0.0
    %305 = vmatprep.subr.mxu0 0.0
    %306 = vmatpush1.msra.mxu0 0.0
    %307 = vmatprep.subr.mxu0 0.0
    %308 = vmatpush1.msra.mxu0 0.0
    %309 = vmatprep.subr.mxu0 0.0
    %310 = vmatpush1.msra.mxu0 0.0
    %311 = vmatprep.subr.mxu0 0.0
    %312 = vmatpush1.msra.mxu0 0.0
    %313 = vmatprep.mubr.f32.mxu0 0.0
    %314 = vmatmul.mubr.f32.gmra.mrb[0].mxu0 %v224
    %v315 = vpop.f32.mrb[0].mxu0
    %v316 = vadd.f32 %v247, %v315
    %v317 = vpop.f32.mrb[0].mxu0
    %318 = vmatprep.mubr.f32.mxu0 0.0
    %319 = vmatmul.mubr.f32.gmra.mrb[0].mxu0 %v225
    %v320 = vpop.f32.mrb[0].mxu0
    %v321 = vadd.f32 %v247, %v320
    %v322 = vpop.f32.mrb[0].mxu0
    %323 = vdwg.mxu0
    %vm324 = vcmp.ge.f32.partialorder %v316, 0.0
    %vm325 = vcmp.ge.f32.partialorder %v321, 0.0
    %v326 = vmul.f32 %v316, 0.01
    %v327 = vmul.f32 %v321, 0.01
    %v328 = vsel %vm324, %v316, %v326
    %v329 = vsel %vm325, %v321, %v327
    %v330 = vld [vmem:[#allocation7] sm:$0xff]
    %v331 = vld [vmem:[#allocation7 + $0x8] sm:$0xff]
    %v332 = vld [vmem:[#allocation7 + $0x10] sm:$0xff]
    %v333 = vld [vmem:[#allocation7 + $0x18] sm:$0xff]
    %v334 = vld [vmem:[#allocation7 + $0x20] sm:$0xff]
    %v335 = vld [vmem:[#allocation7 + $0x28] sm:$0xff]
    %v336 = vld [vmem:[#allocation7 + $0x30] sm:$0xff]
    %v337 = vld [vmem:[#allocation7 + $0x38] sm:$0xff]
    %v338 = vld [vmem:[#allocation7 + $0x40] sm:$0xff]
    %v339 = vld [vmem:[#allocation7 + $0x48] sm:$0xff]
    %v340 = vld [vmem:[#allocation7 + $0x50] sm:$0xff]
    %v341 = vld [vmem:[#allocation7 + $0x58] sm:$0xff]
    %v342 = vld [vmem:[#allocation7 + $0x60] sm:$0xff]
    %v343 = vld [vmem:[#allocation7 + $0x68] sm:$0xff]
    %v344 = vld [vmem:[#allocation7 + $0x70] sm:$0xff]
    %v345 = vld [vmem:[#allocation7 + $0x78] sm:$0xff]
    %v346 = vld [vmem:[#allocation7 + $0x80] sm:$0xff]
    %v347 = vld [vmem:[#allocation7 + $0x88] sm:$0xff]
    %v348 = vld [vmem:[#allocation7 + $0x90] sm:$0xff]
    %v349 = vld [vmem:[#allocation7 + $0x98] sm:$0xff]
    %v350 = vld [vmem:[#allocation7 + $0xa0] sm:$0xff]
    %v351 = vld [vmem:[#allocation7 + $0xa8] sm:$0xff]
    %v352 = vld [vmem:[#allocation7 + $0xb0] sm:$0xff]
    %v353 = vld [vmem:[#allocation7 + $0xb8] sm:$0xff]
    %v354 = vld [vmem:[#allocation7 + $0xc0] sm:$0xff]
    %v355 = vld [vmem:[#allocation7 + $0xc8] sm:$0xff]
    %v356 = vld [vmem:[#allocation7 + $0xd0] sm:$0xff]
    %v357 = vld [vmem:[#allocation7 + $0xd8] sm:$0xff]
    %v358 = vld [vmem:[#allocation7 + $0xe0] sm:$0xff]
    %v359 = vld [vmem:[#allocation7 + $0xe8] sm:$0xff]
    %v360 = vld [vmem:[#allocation7 + $0xf0] sm:$0xff]
    %v361 = vld [vmem:[#allocation7 + $0xf8] sm:$0xff]
    %v362 = vld [vmem:[%s7] sm:$0x3]
    %v364 = vlaneseq
    %v365 = vshrl.u32 %v364, 7
    %v366 = vsub.s32 0, %v365
    %v367 = vrot.slane %v362, %v366
    %v368 = vlaneseq
    %v369 = vshrl.u32 %v368, 7
    %v370 = vsub.s32 1, %v369
    %v371 = vrot.slane %v362, %v370
    %374 = vmatprep.subr.mxu0 %v331
    %375 = vmatpush1.msra.mxu0 %v330
    %376 = vmatprep.subr.mxu0 %v333
    %377 = vmatpush1.msra.mxu0 %v332
    %378 = vmatprep.subr.mxu0 %v335
    %379 = vmatpush1.msra.mxu0 %v334
    %380 = vmatprep.subr.mxu0 %v337
    %381 = vmatpush1.msra.mxu0 %v336
    %382 = vmatprep.subr.mxu0 %v339
    %383 = vmatpush1.msra.mxu0 %v338
    %384 = vmatprep.subr.mxu0 %v341
    %385 = vmatpush1.msra.mxu0 %v340
    %386 = vmatprep.subr.mxu0 %v343
    %387 = vmatpush1.msra.mxu0 %v342
    %388 = vmatprep.subr.mxu0 %v345
    %389 = vmatpush1.msra.mxu0 %v344
    %390 = vmatprep.subr.mxu0 %v347
    %391 = vmatpush1.msra.mxu0 %v346
    %392 = vmatprep.subr.mxu0 %v349
    %393 = vmatpush1.msra.mxu0 %v348
    %394 = vmatprep.subr.mxu0 %v351
    %395 = vmatpush1.msra.mxu0 %v350
    %396 = vmatprep.subr.mxu0 %v353
    %397 = vmatpush1.msra.mxu0 %v352
    %398 = vmatprep.subr.mxu0 %v355
    %399 = vmatpush1.msra.mxu0 %v354
    %400 = vmatprep.subr.mxu0 %v357
    %401 = vmatpush1.msra.mxu0 %v356
    %402 = vmatprep.subr.mxu0 %v359
    %403 = vmatpush1.msra.mxu0 %v358
    %404 = vmatprep.subr.mxu0 %v361
    %405 = vmatpush1.msra.mxu0 %v360
    %406 = vmatprep.subr.mxu0 0.0
    %407 = vmatpush1.msra.mxu0 0.0
    %408 = vmatprep.subr.mxu0 0.0
    %409 = vmatpush1.msra.mxu0 0.0
    %410 = vmatprep.subr.mxu0 0.0
    %411 = vmatpush1.msra.mxu0 0.0
    %412 = vmatprep.subr.mxu0 0.0
    %413 = vmatpush1.msra.mxu0 0.0
    %414 = vmatprep.subr.mxu0 0.0
    %415 = vmatpush1.msra.mxu0 0.0
    %416 = vmatprep.subr.mxu0 0.0
    %417 = vmatpush1.msra.mxu0 0.0
    %418 = vmatprep.subr.mxu0 0.0
    %419 = vmatpush1.msra.mxu0 0.0
    %420 = vmatprep.subr.mxu0 0.0
    %421 = vmatpush1.msra.mxu0 0.0
    %422 = vmatprep.subr.mxu0 0.0
    %423 = vmatpush1.msra.mxu0 0.0
    %424 = vmatprep.subr.mxu0 0.0
    %425 = vmatpush1.msra.mxu0 0.0
    %426 = vmatprep.subr.mxu0 0.0
    %427 = vmatpush1.msra.mxu0 0.0
    %428 = vmatprep.subr.mxu0 0.0
    %429 = vmatpush1.msra.mxu0 0.0
    %430 = vmatprep.subr.mxu0 0.0
    %431 = vmatpush1.msra.mxu0 0.0
    %432 = vmatprep.subr.mxu0 0.0
    %433 = vmatpush1.msra.mxu0 0.0
    %434 = vmatprep.subr.mxu0 0.0
    %435 = vmatpush1.msra.mxu0 0.0
    %436 = vmatprep.subr.mxu0 0.0
    %437 = vmatpush1.msra.mxu0 0.0
    %438 = vmatprep.mubr.f32.mxu0 0.0
    %439 = vmatmul.mubr.f32.gmra.mrb[0].mxu0 %v328
    %v440 = vpop.f32.mrb[0].mxu0
    %v441 = vadd.f32 %v367, %v440
    %v442 = vpop.f32.mrb[0].mxu0
    %v443 = vadd.f32 %v371, %v442
    %444 = vmatprep.mubr.f32.mxu0 0.0
    %445 = vmatmul.mubr.f32.gmra.mrb[0].mxu0 %v329
    %v446 = vpop.f32.mrb[0].mxu0
    %v447 = vadd.f32 %v367, %v446
    %v448 = vpop.f32.mrb[0].mxu0
    %v449 = vadd.f32 %v371, %v448
    %450 = vdwg.mxu0
    %451 = vst [vmem:[#allocation12] sm:$0xff] %v441
    %452 = vst [vmem:[#allocation12 + $0x8] sm:$0xff] %v447
    %453 = vst [vmem:[#allocation14] sm:$0xff] %v443
    %454 = vst [vmem:[#allocation14 + $0x8] sm:$0xff] %v449
    %v455 = vld [vmem:[%s1] sm:$0xff]
    %v456 = vld [vmem:[%s1 + $0x8] sm:$0xff]
    %v457 = vmul.f32 %v443, 0.5
    %v458 = vmul.f32 %v449, 0.5
    %v459 = vmul.f32 %v457, 1.442695
    %v460 = vpow.pop %v459
    %v461 = vmul.f32 %v458, 1.442695
    %v462 = vpow.pop %v461
    %v463 = vmul.f32 %v455, %v460
    %v464 = vmul.f32 %v456, %v462
    %v465 = vadd.f32 %v441, %v463
    %v466 = vadd.f32 %v447, %v464
    %v467 = vld [vmem:[#allocation8] sm:$0xff]
    %v468 = vld [vmem:[#allocation8 + $0x8] sm:$0xff]
    %v469 = vld [vmem:[#allocation8 + $0x10] sm:$0xff]
    %v470 = vld [vmem:[#allocation8 + $0x18] sm:$0xff]
    %v471 = vld [vmem:[#allocation8 + $0x20] sm:$0xff]
    %v472 = vld [vmem:[#allocation8 + $0x28] sm:$0xff]
    %v473 = vld [vmem:[#allocation8 + $0x30] sm:$0xff]
    %v474 = vld [vmem:[#allocation8 + $0x38] sm:$0xff]
    %v475 = vld [vmem:[#allocation8 + $0x40] sm:$0xff]
    %v476 = vld [vmem:[#allocation8 + $0x48] sm:$0xff]
    %v477 = vld [vmem:[#allocation8 + $0x50] sm:$0xff]
    %v478 = vld [vmem:[#allocation8 + $0x58] sm:$0xff]
    %v479 = vld [vmem:[#allocation8 + $0x60] sm:$0xff]
    %v480 = vld [vmem:[#allocation8 + $0x68] sm:$0xff]
    %v481 = vld [vmem:[#allocation8 + $0x70] sm:$0xff]
    %v482 = vld [vmem:[#allocation8 + $0x78] sm:$0xff]
    %v483 = vld [vmem:[%s9] sm:$0x1]
    %v485 = vlaneseq
    %v486 = vshrl.u32 %v485, 7
    %v487 = vsub.s32 0, %v486
    %v488 = vrot.slane %v483, %v487
    %490 = vmatprep.subr.mxu0 0.0
    %491 = vmatpush1.msra.mxu0 %v467
    %492 = vmatprep.subr.mxu0 0.0
    %493 = vmatpush1.msra.mxu0 %v468
    %494 = vmatprep.subr.mxu0 0.0
    %495 = vmatpush1.msra.mxu0 %v469
    %496 = vmatprep.subr.mxu0 0.0
    %497 = vmatpush1.msra.mxu0 %v470
    %498 = vmatprep.subr.mxu0 0.0
    %499 = vmatpush1.msra.mxu0 %v471
    %500 = vmatprep.subr.mxu0 0.0
    %501 = vmatpush1.msra.mxu0 %v472
    %502 = vmatprep.subr.mxu0 0.0
    %503 = vmatpush1.msra.mxu0 %v473
    %504 = vmatprep.subr.mxu0 0.0
    %505 = vmatpush1.msra.mxu0 %v474
    %506 = vmatprep.subr.mxu0 0.0
    %507 = vmatpush1.msra.mxu0 %v475
    %508 = vmatprep.subr.mxu0 0.0
    %509 = vmatpush1.msra.mxu0 %v476
    %510 = vmatprep.subr.mxu0 0.0
    %511 = vmatpush1.msra.mxu0 %v477
    %512 = vmatprep.subr.mxu0 0.0
    %513 = vmatpush1.msra.mxu0 %v478
    %514 = vmatprep.subr.mxu0 0.0
    %515 = vmatpush1.msra.mxu0 %v479
    %516 = vmatprep.subr.mxu0 0.0
    %517 = vmatpush1.msra.mxu0 %v480
    %518 = vmatprep.subr.mxu0 0.0
    %519 = vmatpush1.msra.mxu0 %v481
    %520 = vmatprep.subr.mxu0 0.0
    %521 = vmatpush1.msra.mxu0 %v482
    %522 = vmatprep.subr.mxu0 0.0
    %523 = vmatpush1.msra.mxu0 0.0
    %524 = vmatprep.subr.mxu0 0.0
    %525 = vmatpush1.msra.mxu0 0.0
    %526 = vmatprep.subr.mxu0 0.0
    %527 = vmatpush1.msra.mxu0 0.0
    %528 = vmatprep.subr.mxu0 0.0
    %529 = vmatpush1.msra.mxu0 0.0
    %530 = vmatprep.subr.mxu0 0.0
    %531 = vmatpush1.msra.mxu0 0.0
    %532 = vmatprep.subr.mxu0 0.0
    %533 = vmatpush1.msra.mxu0 0.0
    %534 = vmatprep.subr.mxu0 0.0
    %535 = vmatpush1.msra.mxu0 0.0
    %536 = vmatprep.subr.mxu0 0.0
    %537 = vmatpush1.msra.mxu0 0.0
    %538 = vmatprep.subr.mxu0 0.0
    %539 = vmatpush1.msra.mxu0 0.0
    %540 = vmatprep.subr.mxu0 0.0
    %541 = vmatpush1.msra.mxu0 0.0
    %542 = vmatprep.subr.mxu0 0.0
    %543 = vmatpush1.msra.mxu0 0.0
    %544 = vmatprep.subr.mxu0 0.0
    %545 = vmatpush1.msra.mxu0 0.0
    %546 = vmatprep.subr.mxu0 0.0
    %547 = vmatpush1.msra.mxu0 0.0
    %548 = vmatprep.subr.mxu0 0.0
    %549 = vmatpush1.msra.mxu0 0.0
    %550 = vmatprep.subr.mxu0 0.0
    %551 = vmatpush1.msra.mxu0 0.0
    %552 = vmatprep.subr.mxu0 0.0
    %553 = vmatpush1.msra.mxu0 0.0
    %554 = vmatprep.mubr.f32.mxu0 0.0
    %555 = vmatmul.mubr.f32.gmra.mrb[0].mxu0 %v465
    %v556 = vpop.f32.mrb[0].mxu0
    %v557 = vadd.f32 %v488, %v556
    %v558 = vpop.f32.mrb[0].mxu0
    %559 = vmatprep.mubr.f32.mxu0 0.0
    %560 = vmatmul.mubr.f32.gmra.mrb[0].mxu0 %v466
    %v561 = vpop.f32.mrb[0].mxu0
    %v562 = vadd.f32 %v488, %v561
    %v563 = vpop.f32.mrb[0].mxu0
    %564 = vdwg.mxu0
    %vm565 = vcmp.ge.f32.partialorder %v557, 0.0
    %vm566 = vcmp.ge.f32.partialorder %v562, 0.0
    %v567 = vmul.f32 %v557, 0.01
    %v568 = vmul.f32 %v562, 0.01
    %v569 = vsel %vm565, %v557, %v567
    %v570 = vsel %vm566, %v562, %v568
    %v571 = vld [vmem:[#allocation10] sm:$0xff]
    %v572 = vld [vmem:[#allocation10 + $0x8] sm:$0xff]
    %v573 = vld [vmem:[#allocation10 + $0x10] sm:$0xff]
    %v574 = vld [vmem:[#allocation10 + $0x18] sm:$0xff]
    %v575 = vld [vmem:[#allocation10 + $0x20] sm:$0xff]
    %v576 = vld [vmem:[#allocation10 + $0x28] sm:$0xff]
    %v577 = vld [vmem:[#allocation10 + $0x30] sm:$0xff]
    %v578 = vld [vmem:[#allocation10 + $0x38] sm:$0xff]
    %v579 = vld [vmem:[#allocation10 + $0x40] sm:$0xff]
    %v580 = vld [vmem:[#allocation10 + $0x48] sm:$0xff]
    %v581 = vld [vmem:[#allocation10 + $0x50] sm:$0xff]
    %v582 = vld [vmem:[#allocation10 + $0x58] sm:$0xff]
    %v583 = vld [vmem:[#allocation10 + $0x60] sm:$0xff]
    %v584 = vld [vmem:[#allocation10 + $0x68] sm:$0xff]
    %v585 = vld [vmem:[#allocation10 + $0x70] sm:$0xff]
    %v586 = vld [vmem:[#allocation10 + $0x78] sm:$0xff]
    %v587 = vld [vmem:[%s11] sm:$0x1]
    %v589 = vlaneseq
    %v590 = vshrl.u32 %v589, 7
    %v591 = vsub.s32 0, %v590
    %v592 = vrot.slane %v587, %v591
    %594 = vmatprep.subr.mxu0 0.0
    %595 = vmatpush1.msra.mxu0 %v571
    %596 = vmatprep.subr.mxu0 0.0
    %597 = vmatpush1.msra.mxu0 %v572
    %598 = vmatprep.subr.mxu0 0.0
    %599 = vmatpush1.msra.mxu0 %v573
    %600 = vmatprep.subr.mxu0 0.0
    %601 = vmatpush1.msra.mxu0 %v574
    %602 = vmatprep.subr.mxu0 0.0
    %603 = vmatpush1.msra.mxu0 %v575
    %604 = vmatprep.subr.mxu0 0.0
    %605 = vmatpush1.msra.mxu0 %v576
    %606 = vmatprep.subr.mxu0 0.0
    %607 = vmatpush1.msra.mxu0 %v577
    %608 = vmatprep.subr.mxu0 0.0
    %609 = vmatpush1.msra.mxu0 %v578
    %610 = vmatprep.subr.mxu0 0.0
    %611 = vmatpush1.msra.mxu0 %v579
    %612 = vmatprep.subr.mxu0 0.0
    %613 = vmatpush1.msra.mxu0 %v580
    %614 = vmatprep.subr.mxu0 0.0
    %615 = vmatpush1.msra.mxu0 %v581
    %616 = vmatprep.subr.mxu0 0.0
    %617 = vmatpush1.msra.mxu0 %v582
    %618 = vmatprep.subr.mxu0 0.0
    %619 = vmatpush1.msra.mxu0 %v583
    %620 = vmatprep.subr.mxu0 0.0
    %621 = vmatpush1.msra.mxu0 %v584
    %622 = vmatprep.subr.mxu0 0.0
    %623 = vmatpush1.msra.mxu0 %v585
    %624 = vmatprep.subr.mxu0 0.0
    %625 = vmatpush1.msra.mxu0 %v586
    %626 = vmatprep.subr.mxu0 0.0
    %627 = vmatpush1.msra.mxu0 0.0
    %628 = vmatprep.subr.mxu0 0.0
    %629 = vmatpush1.msra.mxu0 0.0
    %630 = vmatprep.subr.mxu0 0.0
    %631 = vmatpush1.msra.mxu0 0.0
    %632 = vmatprep.subr.mxu0 0.0
    %633 = vmatpush1.msra.mxu0 0.0
    %634 = vmatprep.subr.mxu0 0.0
    %635 = vmatpush1.msra.mxu0 0.0
    %636 = vmatprep.subr.mxu0 0.0
    %637 = vmatpush1.msra.mxu0 0.0
    %638 = vmatprep.subr.mxu0 0.0
    %639 = vmatpush1.msra.mxu0 0.0
    %640 = vmatprep.subr.mxu0 0.0
    %641 = vmatpush1.msra.mxu0 0.0
    %642 = vmatprep.subr.mxu0 0.0
    %643 = vmatpush1.msra.mxu0 0.0
    %644 = vmatprep.subr.mxu0 0.0
    %645 = vmatpush1.msra.mxu0 0.0
    %646 = vmatprep.subr.mxu0 0.0
    %647 = vmatpush1.msra.mxu0 0.0
    %648 = vmatprep.subr.mxu0 0.0
    %649 = vmatpush1.msra.mxu0 0.0
    %650 = vmatprep.subr.mxu0 0.0
    %651 = vmatpush1.msra.mxu0 0.0
    %652 = vmatprep.subr.mxu0 0.0
    %653 = vmatpush1.msra.mxu0 0.0
    %654 = vmatprep.subr.mxu0 0.0
    %655 = vmatpush1.msra.mxu0 0.0
    %656 = vmatprep.subr.mxu0 0.0
    %657 = vmatpush1.msra.mxu0 0.0
    %658 = vmatprep.mubr.f32.mxu0 0.0
    %659 = vmatmul.mubr.f32.gmra.mrb[0].mxu0 %v569
    %v660 = vpop.f32.mrb[0].mxu0
    %v661 = vadd.f32 %v592, %v660
    %v662 = vpop.f32.mrb[0].mxu0
    %663 = vmatprep.mubr.f32.mxu0 0.0
    %664 = vmatmul.mubr.f32.gmra.mrb[0].mxu0 %v570
    %v665 = vpop.f32.mrb[0].mxu0
    %v666 = vadd.f32 %v592, %v665
    %v667 = vpop.f32.mrb[0].mxu0
    %668 = vdwg.mxu0
    %vm669 = vcmp.ge.f32.partialorder %v661, 0.0
    %vm670 = vcmp.ge.f32.partialorder %v666, 0.0
    %v671 = vmul.f32 %v661, 0.01
    %v672 = vmul.f32 %v666, 0.01
    %v673 = vsel %vm669, %v661, %v671
    %v674 = vsel %vm670, %v666, %v672
    %v675 = vld [vmem:[%s12] sm:$0xff]
    %v676 = vld [vmem:[%s12 + $0x8] sm:$0xff]
    %v677 = vld [vmem:[%s12 + $0x10] sm:$0xff]
    %v678 = vld [vmem:[%s12 + $0x18] sm:$0xff]
    %v679 = vld [vmem:[%s12 + $0x20] sm:$0xff]
    %v680 = vld [vmem:[%s12 + $0x28] sm:$0xff]
    %v681 = vld [vmem:[%s12 + $0x30] sm:$0xff]
    %v682 = vld [vmem:[%s12 + $0x38] sm:$0xff]
    %v683 = vld [vmem:[%s12 + $0x40] sm:$0xff]
    %v684 = vld [vmem:[%s12 + $0x48] sm:$0xff]
    %v685 = vld [vmem:[%s12 + $0x50] sm:$0xff]
    %v686 = vld [vmem:[%s12 + $0x58] sm:$0xff]
    %v687 = vld [vmem:[%s12 + $0x60] sm:$0xff]
    %v688 = vld [vmem:[%s12 + $0x68] sm:$0xff]
    %v689 = vld [vmem:[%s12 + $0x70] sm:$0xff]
    %v690 = vld [vmem:[%s12 + $0x78] sm:$0xff]
    %v691 = vld [vmem:[%s13] sm:$0x1]
    %v693 = vlaneseq
    %v694 = vshrl.u32 %v693, 7
    %v695 = vsub.s32 0, %v694
    %v696 = vrot.slane %v691, %v695
    %698 = vmatprep.subr.mxu0 0.0
    %699 = vmatpush1.msra.mxu0 %v675
    %700 = vmatprep.subr.mxu0 0.0
    %701 = vmatpush1.msra.mxu0 %v676
    %702 = vmatprep.subr.mxu0 0.0
    %703 = vmatpush1.msra.mxu0 %v677
    %704 = vmatprep.subr.mxu0 0.0
    %705 = vmatpush1.msra.mxu0 %v678
    %706 = vmatprep.subr.mxu0 0.0
    %707 = vmatpush1.msra.mxu0 %v679
    %708 = vmatprep.subr.mxu0 0.0
    %709 = vmatpush1.msra.mxu0 %v680
    %710 = vmatprep.subr.mxu0 0.0
    %711 = vmatpush1.msra.mxu0 %v681
    %712 = vmatprep.subr.mxu0 0.0
    %713 = vmatpush1.msra.mxu0 %v682
    %714 = vmatprep.subr.mxu0 0.0
    %715 = vmatpush1.msra.mxu0 %v683
    %716 = vmatprep.subr.mxu0 0.0
    %717 = vmatpush1.msra.mxu0 %v684
    %718 = vmatprep.subr.mxu0 0.0
    %719 = vmatpush1.msra.mxu0 %v685
    %720 = vmatprep.subr.mxu0 0.0
    %721 = vmatpush1.msra.mxu0 %v686
    %722 = vmatprep.subr.mxu0 0.0
    %723 = vmatpush1.msra.mxu0 %v687
    %724 = vmatprep.subr.mxu0 0.0
    %725 = vmatpush1.msra.mxu0 %v688
    %726 = vmatprep.subr.mxu0 0.0
    %727 = vmatpush1.msra.mxu0 %v689
    %728 = vmatprep.subr.mxu0 0.0
    %729 = vmatpush1.msra.mxu0 %v690
    %730 = vmatprep.subr.mxu0 0.0
    %731 = vmatpush1.msra.mxu0 0.0
    %732 = vmatprep.subr.mxu0 0.0
    %733 = vmatpush1.msra.mxu0 0.0
    %734 = vmatprep.subr.mxu0 0.0
    %735 = vmatpush1.msra.mxu0 0.0
    %736 = vmatprep.subr.mxu0 0.0
    %737 = vmatpush1.msra.mxu0 0.0
    %738 = vmatprep.subr.mxu0 0.0
    %739 = vmatpush1.msra.mxu0 0.0
    %740 = vmatprep.subr.mxu0 0.0
    %741 = vmatpush1.msra.mxu0 0.0
    %742 = vmatprep.subr.mxu0 0.0
    %743 = vmatpush1.msra.mxu0 0.0
    %744 = vmatprep.subr.mxu0 0.0
    %745 = vmatpush1.msra.mxu0 0.0
    %746 = vmatprep.subr.mxu0 0.0
    %747 = vmatpush1.msra.mxu0 0.0
    %748 = vmatprep.subr.mxu0 0.0
    %749 = vmatpush1.msra.mxu0 0.0
    %750 = vmatprep.subr.mxu0 0.0
    %751 = vmatpush1.msra.mxu0 0.0
    %752 = vmatprep.subr.mxu0 0.0
    %753 = vmatpush1.msra.mxu0 0.0
    %754 = vmatprep.subr.mxu0 0.0
    %755 = vmatpush1.msra.mxu0 0.0
    %756 = vmatprep.subr.mxu0 0.0
    %757 = vmatpush1.msra.mxu0 0.0
    %758 = vmatprep.subr.mxu0 0.0
    %759 = vmatpush1.msra.mxu0 0.0
    %760 = vmatprep.subr.mxu0 0.0
    %761 = vmatpush1.msra.mxu0 0.0
    %762 = vmatprep.mubr.f32.mxu0 0.0
    %763 = vmatmul.mubr.f32.gmra.mrb[0].mxu0 %v673
    %v764 = vpop.f32.mrb[0].mxu0
    %v765 = vadd.f32 %v696, %v764
    %v766 = vpop.f32.mrb[0].mxu0
    %767 = vmatprep.mubr.f32.mxu0 0.0
    %768 = vmatmul.mubr.f32.gmra.mrb[0].mxu0 %v674
    %v769 = vpop.f32.mrb[0].mxu0
    %v770 = vadd.f32 %v696, %v769
    %v771 = vpop.f32.mrb[0].mxu0
    %772 = vdwg.mxu0
    %773 = vst [vmem:[#allocation11] sm:$0xff] %v765
    %774 = vst [vmem:[#allocation11 + $0x8] sm:$0xff] %v770
    // Predicated region
    $region78: #{_lambda_.1} parent=1 // pred_check
      _
    $region79: #{_lambda_.1} parent=1 // pred_check_branch
      %776 = sbr.rel (0) target = $region81
    $region80: #{_lambda_.1} parent=1 // pred_region
      %s778 = ssub.s32 256, 256
      %779 = vsyncadd [#allocation4], %s778
      %s780 = sshll.u32 [#allocation11], 4
      %s781 = int_to_ptr.vmem [resolvable:$true] %s780
      %786 = dma.vmem_to_hbm [thread:$0]  %s781, 256, %s14, [#allocation4], 128, 128, 8
    $region81: #{_lambda_.1} parent=1 // pred_fallthru
      _
    // Predicated region
    $region82: #{_lambda_.1} parent=1 // pred_check
      _
    $region83: #{_lambda_.1} parent=1 // pred_check_branch
      %788 = sbr.rel (0) target = $region85
    $region84: #{_lambda_.1} parent=1 // pred_region
      %s790 = ssub.s32 256, 256
      %791 = vsyncadd [#allocation13], %s790
      %s792 = sshll.u32 [#allocation12], 4
      %s793 = int_to_ptr.vmem [resolvable:$true] %s792
      %798 = dma.vmem_to_hbm [thread:$0]  %s793, 256, %s15, [#allocation13], 128, 128, 8
    $region85: #{_lambda_.1} parent=1 // pred_fallthru
      _
    // Predicated region
    $region86: #{_lambda_.1} parent=1 // pred_check
      _
    $region87: #{_lambda_.1} parent=1 // pred_check_branch
      %800 = sbr.rel (0) target = $region89
    $region88: #{_lambda_.1} parent=1 // pred_region
      %s802 = ssub.s32 256, 256
      %803 = vsyncadd [#allocation13], %s802
      %s804 = sshll.u32 [#allocation14], 4
      %s805 = int_to_ptr.vmem [resolvable:$true] %s804
      %810 = dma.vmem_to_hbm [thread:$0]  %s805, 256, %s16, [#allocation13], 128, 128, 8
    $region89: #{_lambda_.1} parent=1 // pred_fallthru
      _
    // Predicated region
    $region90: #{_lambda_.1} parent=1 // pred_check
      _
    $region91: #{_lambda_.1} parent=1 // pred_check_branch
      %812 = sbr.rel (0) target = $region93
    $region92: #{_lambda_.1} parent=1 // pred_region
      %813 = dma.done [#allocation4], 256
    $region93: #{_lambda_.1} parent=1 // pred_fallthru
      _
    // Predicated region
    $region94: #{_lambda_.1} parent=1 // pred_check
      _
    $region95: #{_lambda_.1} parent=1 // pred_check_branch
      %815 = sbr.rel (0) target = $region97
    $region96: #{_lambda_.1} parent=1 // pred_region
      %816 = dma.done [#allocation13], 256
    $region97: #{_lambda_.1} parent=1 // pred_fallthru
      _
    // Predicated region
    $region98: #{_lambda_.1} parent=1 // pred_check
      _
    $region99: #{_lambda_.1} parent=1 // pred_check_branch
      %818 = sbr.rel (0) target = $region101
    $region100: #{_lambda_.1} parent=1 // pred_region
      %819 = dma.done [#allocation13], 256
    $region101: #{_lambda_.1} parent=1 // pred_fallthru
      _
    %820 = vsyncpa [#allocation3], 1
    %821 = vsyncpa [#allocation6], 1
    %822 = vsyncpa [#allocation9], 1
    %823 = vsyncpa [#allocation4], 1
    %824 = vsyncpa [#allocation13], 1

</llo_original>
